<compile_context>
chip_gen: v7x
topology: tpu7x:2x2x1
jax: 0.10.0
libtpu: 0.0.40
codegen_flags: <defaults>
</compile_context>

<pallas_src>
import jax
import jax.numpy as jnp
from jax.experimental import pallas as pl
from jax.experimental.pallas import tpu as pltpu


def _permute_linear_relu_kernel(x_ref, wb_ref, o_ref):
    """Fused permute(0,2,1) + Linear + ReLU on the scalar core.

    x_ref:  (B, C, N) f32 in SMEM        (PyTorch layout of x1)
    wb_ref: (D*C + D,) f32 in SMEM       [W row-major (D,C) | bias (D,)]
    o_ref:  (B, N, D) f32 in SMEM
        out[b, n, d] = relu(sum_c x[b, c, n] * W[d, c] + bias[d])
    """
    B, C, N = x_ref.shape
    D = wb_ref.shape[0] // (C + 1)
    bias_off = D * C
    zero = jnp.float32(0.0)
    # Static trace-time unroll: B*N*D = 4 outputs, C = 2 FMAs each.
    for b in range(B):
        for n in range(N):
            for d in range(D):
                acc = wb_ref[bias_off + d]
                for c in range(C):
                    acc = acc + x_ref[b, c, n] * wb_ref[d * C + c]
                o_ref[b, n, d] = jnp.maximum(acc, zero)


def pack_params(weight, bias):
    """Pack nn.Linear params once (outside the hot path) into flat f32[D*C+D]."""
    return jnp.concatenate(
        [weight.reshape(-1), bias.reshape(-1)]).astype(jnp.float32)


@jax.jit
def model_forward(x1, wb):
    """Reproduces Model.forward: relu(linear(permute(x1, (0, 2, 1)), W, b))."""
    B, C, N = x1.shape
    D = wb.shape[0] // (C + 1)
    bytes_accessed = 4 * (B * C * N + wb.shape[0] + B * N * D)
    return pl.pallas_call(
        _permute_linear_relu_kernel,
        out_shape=jax.ShapeDtypeStruct((B, N, D), jnp.float32),
        in_specs=[
            pl.BlockSpec(memory_space=pltpu.SMEM),   # x1 (B, C, N)
            pl.BlockSpec(memory_space=pltpu.SMEM),   # packed [W | bias]
        ],
        out_specs=pl.BlockSpec(memory_space=pltpu.SMEM),
        cost_estimate=pl.CostEstimate(
            flops=2 * B * N * D * C,
            transcendentals=0,
            bytes_accessed=bytes_accessed,
        ),
    )(x1, wb)


if __name__ == "__main__":
    key = jax.random.PRNGKey(0)
    k_x, k_w, k_b = jax.random.split(key, 3)

    # Input matching torch.randn(1, 2, 2)
    x1 = jax.random.normal(k_x, (1, 2, 2), dtype=jnp.float32)

    # Deterministic nn.Linear(2, 2) params: uniform(-1/sqrt(2), 1/sqrt(2))
    in_features = 2
    bound = 1.0 / jnp.sqrt(jnp.float32(in_features))
    weight = jax.random.uniform(k_w, (2, 2), minval=-bound, maxval=bound,
                                dtype=jnp.float32)
    bias = jax.random.uniform(k_b, (2,), minval=-bound, maxval=bound,
                              dtype=jnp.float32)

    # Pack W + bias ONCE; reused across all forward calls.
    wb = jax.block_until_ready(pack_params(weight, bias))

    out = model_forward(x1, wb)
    out = jax.block_until_ready(out)

    # Pure-JAX reference check
    ref = jnp.maximum(
        jnp.einsum("bnc,dc->bnd", jnp.transpose(x1, (0, 2, 1)), weight) + bias,
        0.0,
    )
    assert out.shape == (1, 2, 2), out.shape
    assert jnp.allclose(out, ref, atol=1e-5), (out, ref)

    print("KERNEL_OK")
</pallas_src>

<mosaic_0001>
module attributes {stable_mosaic.version = 11 : i64} {
  func.func @_permute_linear_relu_kernel(%arg0: memref<1x2x2xf32, #tpu.memory_space<smem>>, %arg1: memref<6xf32, #tpu.memory_space<smem>>, %arg2: memref<1x2x2xf32, #tpu.memory_space<smem>>) attributes {dimension_semantics = [], scalar_prefetch = 0 : i64, scratch_operands = 0 : i64, tpu.core_type = #tpu.core_type<tc>} {
    %c4 = arith.constant 4 : index
    %0 = memref.load %arg1[%c4] : memref<6xf32, #tpu.memory_space<smem>>
    %c0 = arith.constant 0 : index
    %c0_0 = arith.constant 0 : index
    %c0_1 = arith.constant 0 : index
    %1 = memref.load %arg0[%c0, %c0_0, %c0_1] : memref<1x2x2xf32, #tpu.memory_space<smem>>
    %c0_2 = arith.constant 0 : index
    %2 = memref.load %arg1[%c0_2] : memref<6xf32, #tpu.memory_space<smem>>
    %3 = arith.mulf %1, %2 : f32
    %4 = arith.addf %0, %3 : f32
    %c0_3 = arith.constant 0 : index
    %c1 = arith.constant 1 : index
    %c0_4 = arith.constant 0 : index
    %5 = memref.load %arg0[%c0_3, %c1, %c0_4] : memref<1x2x2xf32, #tpu.memory_space<smem>>
    %c1_5 = arith.constant 1 : index
    %6 = memref.load %arg1[%c1_5] : memref<6xf32, #tpu.memory_space<smem>>
    %7 = arith.mulf %5, %6 : f32
    %8 = arith.addf %4, %7 : f32
    %cst = arith.constant 0.000000e+00 : f32
    %9 = arith.maximumf %8, %cst : f32
    %c0_6 = arith.constant 0 : index
    %c0_7 = arith.constant 0 : index
    %c0_8 = arith.constant 0 : index
    %10 = memref.load %arg2[%c0_6, %c0_7, %c0_8] : memref<1x2x2xf32, #tpu.memory_space<smem>>
    memref.store %9, %arg2[%c0_6, %c0_7, %c0_8] : memref<1x2x2xf32, #tpu.memory_space<smem>>
    %c5 = arith.constant 5 : index
    %11 = memref.load %arg1[%c5] : memref<6xf32, #tpu.memory_space<smem>>
    %c0_9 = arith.constant 0 : index
    %c0_10 = arith.constant 0 : index
    %c0_11 = arith.constant 0 : index
    %12 = memref.load %arg0[%c0_9, %c0_10, %c0_11] : memref<1x2x2xf32, #tpu.memory_space<smem>>
    %c2 = arith.constant 2 : index
    %13 = memref.load %arg1[%c2] : memref<6xf32, #tpu.memory_space<smem>>
    %14 = arith.mulf %12, %13 : f32
    %15 = arith.addf %11, %14 : f32
    %c0_12 = arith.constant 0 : index
    %c1_13 = arith.constant 1 : index
    %c0_14 = arith.constant 0 : index
    %16 = memref.load %arg0[%c0_12, %c1_13, %c0_14] : memref<1x2x2xf32, #tpu.memory_space<smem>>
    %c3 = arith.constant 3 : index
    %17 = memref.load %arg1[%c3] : memref<6xf32, #tpu.memory_space<smem>>
    %18 = arith.mulf %16, %17 : f32
    %19 = arith.addf %15, %18 : f32
    %cst_15 = arith.constant 0.000000e+00 : f32
    %20 = arith.maximumf %19, %cst_15 : f32
    %c0_16 = arith.constant 0 : index
    %c0_17 = arith.constant 0 : index
    %c1_18 = arith.constant 1 : index
    %21 = memref.load %arg2[%c0_16, %c0_17, %c1_18] : memref<1x2x2xf32, #tpu.memory_space<smem>>
    memref.store %20, %arg2[%c0_16, %c0_17, %c1_18] : memref<1x2x2xf32, #tpu.memory_space<smem>>
    %c4_19 = arith.constant 4 : index
    %22 = memref.load %arg1[%c4_19] : memref<6xf32, #tpu.memory_space<smem>>
    %c0_20 = arith.constant 0 : index
    %c0_21 = arith.constant 0 : index
    %c1_22 = arith.constant 1 : index
    %23 = memref.load %arg0[%c0_20, %c0_21, %c1_22] : memref<1x2x2xf32, #tpu.memory_space<smem>>
    %c0_23 = arith.constant 0 : index
    %24 = memref.load %arg1[%c0_23] : memref<6xf32, #tpu.memory_space<smem>>
    %25 = arith.mulf %23, %24 : f32
    %26 = arith.addf %22, %25 : f32
    %c0_24 = arith.constant 0 : index
    %c1_25 = arith.constant 1 : index
    %c1_26 = arith.constant 1 : index
    %27 = memref.load %arg0[%c0_24, %c1_25, %c1_26] : memref<1x2x2xf32, #tpu.memory_space<smem>>
    %c1_27 = arith.constant 1 : index
    %28 = memref.load %arg1[%c1_27] : memref<6xf32, #tpu.memory_space<smem>>
    %29 = arith.mulf %27, %28 : f32
    %30 = arith.addf %26, %29 : f32
    %cst_28 = arith.constant 0.000000e+00 : f32
    %31 = arith.maximumf %30, %cst_28 : f32
    %c0_29 = arith.constant 0 : index
    %c1_30 = arith.constant 1 : index
    %c0_31 = arith.constant 0 : index
    %32 = memref.load %arg2[%c0_29, %c1_30, %c0_31] : memref<1x2x2xf32, #tpu.memory_space<smem>>
    memref.store %31, %arg2[%c0_29, %c1_30, %c0_31] : memref<1x2x2xf32, #tpu.memory_space<smem>>
    %c5_32 = arith.constant 5 : index
    %33 = memref.load %arg1[%c5_32] : memref<6xf32, #tpu.memory_space<smem>>
    %c0_33 = arith.constant 0 : index
    %c0_34 = arith.constant 0 : index
    %c1_35 = arith.constant 1 : index
    %34 = memref.load %arg0[%c0_33, %c0_34, %c1_35] : memref<1x2x2xf32, #tpu.memory_space<smem>>
    %c2_36 = arith.constant 2 : index
    %35 = memref.load %arg1[%c2_36] : memref<6xf32, #tpu.memory_space<smem>>
    %36 = arith.mulf %34, %35 : f32
    %37 = arith.addf %33, %36 : f32
    %c0_37 = arith.constant 0 : index
    %c1_38 = arith.constant 1 : index
    %c1_39 = arith.constant 1 : index
    %38 = memref.load %arg0[%c0_37, %c1_38, %c1_39] : memref<1x2x2xf32, #tpu.memory_space<smem>>
    %c3_40 = arith.constant 3 : index
    %39 = memref.load %arg1[%c3_40] : memref<6xf32, #tpu.memory_space<smem>>
    %40 = arith.mulf %38, %39 : f32
    %41 = arith.addf %37, %40 : f32
    %cst_41 = arith.constant 0.000000e+00 : f32
    %42 = arith.maximumf %41, %cst_41 : f32
    %c0_42 = arith.constant 0 : index
    %c1_43 = arith.constant 1 : index
    %c1_44 = arith.constant 1 : index
    %43 = memref.load %arg2[%c0_42, %c1_43, %c1_44] : memref<1x2x2xf32, #tpu.memory_space<smem>>
    memref.store %42, %arg2[%c0_42, %c1_43, %c1_44] : memref<1x2x2xf32, #tpu.memory_space<smem>>
    return
  }
}

</mosaic_0001>

<llo_original>
// kernel: model_forward.1
$region0: #{model_forward.1}
  #allocation0 [shape = 'u32[]', space=smem, size = 0x4, offset = 0x4, fixed_abs, tag = 'smem constant byte address 0x4 - core index']
  #allocation1 [shape = 'u32[144,128]{1,0:T(1,128)}', space=vmem, size = 0x12000, scoped, tag = 'internal scratch']
  %s0 = inlined_call_operand.hbm [shape: f32[1,2,2], index: 0, kind: input, shape index: {}]
  %s1 = inlined_call_operand.vmem [shape: f32[6], index: 1, kind: input, shape index: {}]
  %s2 = inlined_call_operand.hbm [shape: f32[1,2,2], index: 2, kind: output, shape index: {}]
  %s3 = sld [smem:[#allocation0]]
  $region26: #{model_forward.1} parent=0
    _
  %s5 = ssub.s32 1, %s3
  %s6 = scalar_select 0, %s5, %s3
  $region1: #{model_forward.1} parent=0
    #allocation2 [shape = 'u8[1024]{0}', space=smem, size = 0x400, scoped, tag = 'input window, operand 0, single buffered']
    #allocation3 [shape = 's32[1]{0}', space=sflag, size = 0x4, scoped, tag = 'scoped memory for model_forward.1']
    #allocation4 [shape = 's32[1]{0}', space=sflag, size = 0x4, scoped, tag = 'scoped memory for model_forward.1']
    #allocation5 [shape = 's32[1]{0}', space=sflag, size = 0x4, scoped, tag = 'scoped memory for model_forward.1']
    #allocation6 [shape = 'u8[512]{0}', space=smem, size = 0x200, scoped, tag = 'input window, operand 1, single buffered']
    #allocation7 [shape = 'u8[1024]{0}', space=smem, size = 0x400, scoped, tag = 'output window, operand 0, single buffered']
    %7 = vsyncpa [#allocation3], 0
    %8 = vsyncpa [#allocation5], 0
    %9 = vsyncpa [#allocation4], 0
    // Predicated region
    $region2: #{model_forward.1} parent=1 // pred_check
      _
    $region3: #{model_forward.1} parent=1 // pred_check_branch
      %11 = sbr.rel (0) target = $region5
    $region4: #{model_forward.1} parent=1 // pred_region
      %s13 = ssub.s32 32, 32
      %14 = vsyncadd [#allocation3], %s13
      %17 = dma.hbm_to_smem %s0, 32, [#allocation2], [#allocation3]
    $region5: #{model_forward.1} parent=1 // pred_fallthru
      _
    // Predicated region
    $region6: #{model_forward.1} parent=1 // pred_check
      _
    $region7: #{model_forward.1} parent=1 // pred_check_branch
      %19 = sbr.rel (0) target = $region9
    $region8: #{model_forward.1} parent=1 // pred_region
      %s21 = ssub.s32 16, 16
      %22 = vsyncadd [#allocation5], %s21
      %s24 = sshll.u32 %s1, 4
      %s25 = int_to_ptr.vmem [resolvable:$true] %s24
      %27 = dma.vmem_to_smem %s25, 16, [#allocation6], [#allocation5]
    $region9: #{model_forward.1} parent=1 // pred_fallthru
      _
    // Predicated region
    $region10: #{model_forward.1} parent=1 // pred_check
      _
    $region11: #{model_forward.1} parent=1 // pred_check_branch
      %29 = sbr.rel (0) target = $region13
    $region12: #{model_forward.1} parent=1 // pred_region
      %30 = dma.done [#allocation3], 32
    $region13: #{model_forward.1} parent=1 // pred_fallthru
      _
    // Predicated region
    $region14: #{model_forward.1} parent=1 // pred_check
      _
    $region15: #{model_forward.1} parent=1 // pred_check_branch
      %32 = sbr.rel (0) target = $region17
    $region16: #{model_forward.1} parent=1 // pred_region
      %33 = dma.done [#allocation5], 16
    $region17: #{model_forward.1} parent=1 // pred_fallthru
      _
    %34 = sfence
    %s35 = sld [smem:[#allocation6 + $0x4]]
    %s36 = sld [smem:[#allocation2]]
    %s37 = sld [smem:[#allocation6]]
    %s38 = smul.f32 %s36, %s37
    %s39 = sadd.f32 %s35, %s38
    %s40 = sld [smem:[#allocation2 + $0x80]]
    %s41 = sld [smem:[#allocation6 + $0x1]]
    %s42 = smul.f32 %s40, %s41
    %s43 = sadd.f32 %s39, %s42
    %s44 = smax.f32 %s43, 0.0
    %s45 = scalar_lea.smem [#allocation7], 0
    %46 = sst [smem:[%s45]] %s44
    %s47 = sld [smem:[#allocation6 + $0x5]]
    %s48 = sld [smem:[#allocation2]]
    %s49 = sld [smem:[#allocation6 + $0x2]]
    %s50 = smul.f32 %s48, %s49
    %s51 = sadd.f32 %s47, %s50
    %s52 = sld [smem:[#allocation2 + $0x80]]
    %s53 = sld [smem:[#allocation6 + $0x3]]
    %s54 = smul.f32 %s52, %s53
    %s55 = sadd.f32 %s51, %s54
    %s56 = smax.f32 %s55, 0.0
    %s57 = scalar_lea.smem [#allocation7], 1
    %58 = sst [smem:[%s57]] %s56
    %s59 = sld [smem:[#allocation6 + $0x4]]
    %s60 = sld [smem:[#allocation2 + $0x1]]
    %s61 = sld [smem:[#allocation6]]
    %s62 = smul.f32 %s60, %s61
    %s63 = sadd.f32 %s59, %s62
    %s64 = sld [smem:[#allocation2 + $0x81]]
    %s65 = sld [smem:[#allocation6 + $0x1]]
    %s66 = smul.f32 %s64, %s65
    %s67 = sadd.f32 %s63, %s66
    %s68 = smax.f32 %s67, 0.0
    %s69 = scalar_lea.smem [#allocation7], 128
    %70 = sst [smem:[%s69]] %s68
    %s71 = sld [smem:[#allocation6 + $0x5]]
    %s72 = sld [smem:[#allocation2 + $0x1]]
    %s73 = sld [smem:[#allocation6 + $0x2]]
    %s74 = smul.f32 %s72, %s73
    %s75 = sadd.f32 %s71, %s74
    %s76 = sld [smem:[#allocation2 + $0x81]]
    %s77 = sld [smem:[#allocation6 + $0x3]]
    %s78 = smul.f32 %s76, %s77
    %s79 = sadd.f32 %s75, %s78
    %s80 = smax.f32 %s79, 0.0
    %s81 = scalar_lea.smem [#allocation7], 129
    %82 = sst [smem:[%s81]] %s80
    // Predicated region
    $region18: #{model_forward.1} parent=1 // pred_check
      _
    $region19: #{model_forward.1} parent=1 // pred_check_branch
      %84 = sbr.rel (0) target = $region21
    $region20: #{model_forward.1} parent=1 // pred_region
      %s86 = ssub.s32 32, 32
      %87 = vsyncadd [#allocation4], %s86
      %90 = dma.smem_to_hbm [#allocation7], 32, %s2, [#allocation4]
    $region21: #{model_forward.1} parent=1 // pred_fallthru
      _
    // Predicated region
    $region22: #{model_forward.1} parent=1 // pred_check
      _
    $region23: #{model_forward.1} parent=1 // pred_check_branch
      %92 = sbr.rel (0) target = $region25
    $region24: #{model_forward.1} parent=1 // pred_region
      %93 = dma.done [#allocation4], 32
    $region25: #{model_forward.1} parent=1 // pred_fallthru
      _
    %94 = sfence
    %95 = vsyncpa [#allocation3], 1
    %96 = vsyncpa [#allocation4], 1
    %97 = vsyncpa [#allocation5], 1

</llo_original>
